<compile_context>
chip_gen: v7x
topology: tpu7x:2x2x1
jax: 0.10.0
libtpu: 0.0.40
codegen_flags: <defaults>
</compile_context>

<pallas_src>
import jax
import jax.numpy as jnp
import numpy as np
from jax.experimental import pallas as pl
from jax.experimental.pallas import tpu as pltpu

KSIZE = 15      # conv1 temporal kernel size
STRIDE = 15     # conv1 stride (== kernel -> patches are a pure reshape)
BN_EPS = 1e-5


# ---------------------------------------------------------------------------
# Pass 1: conv1 as an MXU matmul (channels-on-sublanes) + partial BN sums
# ---------------------------------------------------------------------------
def conv_stats_kernel(xp_ref, w_ref, z_ref, st_ref):
    """xp_ref: (BB, CKp, T) bf16 patch columns; w_ref: (P, CKp) bf16 weight;
    z_ref: (BB, P, T) bf16 conv output; st_ref: (P, 2) f32 [sum, sum_sq]."""
    BB = xp_ref.shape[0]
    P = w_ref.shape[0]
    s = jnp.zeros((P, 1), jnp.float32)
    sq = jnp.zeros((P, 1), jnp.float32)
    for b in range(BB):                                   # BB is small & static
        z = jnp.dot(w_ref[...], xp_ref[b],
                    preferred_element_type=jnp.float32)   # (P, T) f32 accum
        z_ref[b] = z.astype(z_ref.dtype)                  # lane-dense bf16 store
        s = s + jnp.sum(z, axis=-1, keepdims=True)        # stats from f32 accum
        sq = sq + jnp.sum(z * z, axis=-1, keepdims=True)
    st_ref[:, 0:1] = s                                    # direct slice stores,
    st_ref[:, 1:2] = sq                                   # no concatenate


# ---------------------------------------------------------------------------
# Pass 2: BN normalize + ReLU + ChannelAttention + SpatialAttention
# ---------------------------------------------------------------------------
def attn_kernel(z_ref, ss_ref, w1_ref, w2_ref, saw_ref, out_ref):
    """z_ref: (BB, P, T) bf16 conv output; ss_ref: (P, 2) folded BN scale/shift;
    w1_ref: (P, R), w2_ref: (R, P) ChannelAttention MLP; saw_ref: (2, 7) SMEM
    SpatialAttention taps (row 0 = avg channel, row 1 = max channel)."""
    BB, P, T = out_ref.shape

    # --- folded BatchNorm + ReLU (single FMA + max, scale/shift broadcast along lanes)
    ss = ss_ref[...]                                               # (P, 2)
    y = jnp.maximum(z_ref[...].astype(jnp.float32) * ss[None, :, 0:1]
                    + ss[None, :, 1:2], 0.0)                       # (BB, P, T)

    # --- ChannelAttention: pooled rows of ALL BB batches in ONE matmul chain ---
    # (R = P//16 is tiny; doing this on the VPU is possible but the MXU chain is
    #  amortized over the whole batch block and off the critical store path.)
    pooled = jnp.concatenate(
        [jnp.mean(y, axis=-1), jnp.max(y, axis=-1)], axis=0)       # (2*BB, P)
    h = jnp.maximum(
        jnp.dot(pooled, w1_ref[...], preferred_element_type=jnp.float32), 0.0)
    o = jnp.dot(h, w2_ref[...], preferred_element_type=jnp.float32)  # (2*BB, P)
    ca = jax.nn.sigmoid(o[:BB] + o[BB:])                           # (BB, P)
    y = y * ca[:, :, None]

    # --- SpatialAttention: 7-tap conv over T as lane rotations (zero padding) ---
    s_avg = jnp.mean(y, axis=1)                                    # (BB, T) lane-major
    s_max = jnp.max(y, axis=1)                                     # (BB, T)
    tt = jax.lax.broadcasted_iota(jnp.int32, (BB, T), 1)
    s_acc = jnp.zeros((BB, T), jnp.float32)
    for k in range(7):                                             # static unroll
        off = k - 3
        ra = pltpu.roll(s_avg, shift=(-off) % T, axis=1)           # x[t+off] (cyclic)
        rm = pltpu.roll(s_max, shift=(-off) % T, axis=1)
        valid = jnp.logical_and(tt + off >= 0, tt + off < T)       # zero padding
        s_acc = s_acc + jnp.where(valid,
                                  saw_ref[0, k] * ra + saw_ref[1, k] * rm,
                                  0.0)
    out_ref[...] = (y * jax.nn.sigmoid(s_acc)[:, None, :]).astype(out_ref.dtype)


# ---------------------------------------------------------------------------
# Wrapper
# ---------------------------------------------------------------------------
def _pick_batch_block(B, per_batch_bytes, cap_bytes=4 << 20):
    """Largest batch block (divisor of B) under the VMEM cap, preferring grids
    with an even number (>=2) of steps so both v7x TensorCores get work."""
    best_key, best = None, 1
    for d in range(1, B + 1):
        if B % d or d * per_batch_bytes > cap_bytes:
            continue
        g = B // d
        key = (g >= 2 and g % 2 == 0, g >= 2, d)
        if best_key is None or key > best_key:
            best_key, best = key, d
    return best


def baseblock3_forward(x, params):
    """x: (B, Cin, L) float32  ->  (B, P, T) float32, T = (L-15)//15 + 1."""
    B, Cin, L = x.shape
    T = (L - KSIZE) // STRIDE + 1
    P = params["conv_w"].shape[0]
    R = params["fc1_w"].shape[0]
    CK = Cin * KSIZE
    CKp = ((CK + 15) // 16) * 16        # pad contraction dim to bf16 sublane tile only
    BT = B * T

    # --- patch tensor, time-on-lanes: xp[b, c*K+k, t] = x[b, c, t*15+k]; bf16 ---
    xp = x[:, :, :T * STRIDE].reshape(B, Cin, T, KSIZE)
    xp = jnp.transpose(xp, (0, 1, 3, 2)).reshape(B, CK, T)
    xp = jnp.pad(xp, ((0, 0), (0, CKp - CK), (0, 0))).astype(jnp.bfloat16)

    # conv weight -> (P, C*K) matching patch ordering; zero-padded columns; bf16
    wconv = params["conv_w"].reshape(P, CK)
    wconv = jnp.pad(wconv, ((0, 0), (0, CKp - CK))).astype(jnp.bfloat16)
    # NOTE: conv bias intentionally unused -- training-mode BN cancels it.

    per_batch_bytes = max(
        (CKp + P) * T * 2,              # pass 1: bf16 patches in + bf16 z out
        P * T * (2 + 4),                # pass 2: bf16 z in + f32 out
    )
    BB = _pick_batch_block(B, per_batch_bytes)
    G = B // BB

    # ---------------- pass 1: conv + partial BN sums (grid over batch blocks) --
    z, stats = pl.pallas_call(
        conv_stats_kernel,
        grid=(G,),
        in_specs=[
            pl.BlockSpec((BB, CKp, T), lambda i: (i, 0, 0)),
            pl.BlockSpec((P, CKp), lambda i: (0, 0)),
        ],
        out_specs=[
            pl.BlockSpec((BB, P, T), lambda i: (i, 0, 0)),
            pl.BlockSpec((None, P, 2), lambda i: (i, 0, 0)),
        ],
        out_shape=[
            jax.ShapeDtypeStruct((B, P, T), jnp.bfloat16),   # bf16 intermediate
            jax.ShapeDtypeStruct((G, P, 2), jnp.float32),
        ],
        compiler_params=pltpu.CompilerParams(dimension_semantics=("parallel",)),
    )(xp, wconv)

    # --- tiny (P,)-sized reduction + BN folding (negligible, plain JAX) ---
    ssum = jnp.sum(stats, axis=0)                                # (P, 2)
    mean = ssum[:, 0] / BT
    var = jnp.maximum(ssum[:, 1] / BT - mean * mean, 0.0)        # biased batch var
    scale = params["bn_gamma"] * jax.lax.rsqrt(var + BN_EPS)
    shift = params["bn_beta"] - mean * scale
    ss = jnp.stack([scale, shift], axis=1).astype(jnp.float32)   # packed (P, 2)

    wfc1 = params["fc1_w"].T.astype(jnp.float32)                 # (P, R)
    wfc2 = params["fc2_w"].T.astype(jnp.float32)                 # (R, P)
    sa_w = params["sa_w"][0].astype(jnp.float32)                 # (2, 7) -> SMEM

    # ---------------- pass 2: normalize + attentions (grid over batch blocks) --
    out = pl.pallas_call(
        attn_kernel,
        grid=(G,),
        in_specs=[
            pl.BlockSpec((BB, P, T), lambda b: (b, 0, 0)),                 # z (bf16)
            pl.BlockSpec((P, 2), lambda b: (0, 0)),                        # scale/shift
            pl.BlockSpec((P, R), lambda b: (0, 0)),                        # fc1^T
            pl.BlockSpec((R, P), lambda b: (0, 0)),                        # fc2^T
            pl.BlockSpec(memory_space=pltpu.MemorySpace.SMEM),             # sa taps
        ],
        out_specs=pl.BlockSpec((BB, P, T), lambda b: (b, 0, 0)),
        out_shape=jax.ShapeDtypeStruct((B, P, T), jnp.float32),
        compiler_params=pltpu.CompilerParams(dimension_semantics=("parallel",)),
    )(z, ss, wfc1, wfc2, sa_w)

    # module contract is NCL (B, P, T) -- already lane-dense; no wrapper transpose.
    return out


# ---------------------------------------------------------------------------
# Pure-JAX reference mirroring the PyTorch module (f32 end to end, with bias)
# ---------------------------------------------------------------------------
def reference_forward(x, params):
    B, Cin, L = x.shape
    T = (L - KSIZE) // STRIDE + 1

    xr = x[:, :, :T * STRIDE].reshape(B, Cin, T, KSIZE)
    y = jnp.einsum("bctk,pck->bpt", xr, params["conv_w"]) \
        + params["conv_b"][None, :, None]

    mean = jnp.mean(y, axis=(0, 2), keepdims=True)
    var = jnp.mean((y - mean) ** 2, axis=(0, 2), keepdims=True)
    y = (y - mean) / jnp.sqrt(var + BN_EPS)
    y = y * params["bn_gamma"][None, :, None] + params["bn_beta"][None, :, None]
    y = jnp.maximum(y, 0.0)

    a = jnp.mean(y, axis=2)
    m = jnp.max(y, axis=2)

    def mlp(v):
        h = jnp.maximum(v @ params["fc1_w"].T, 0.0)
        return h @ params["fc2_w"].T

    ca = jax.nn.sigmoid(mlp(a) + mlp(m))
    y = y * ca[:, :, None]

    s_avg = jnp.mean(y, axis=1, keepdims=True)
    s_max = jnp.max(y, axis=1, keepdims=True)
    scat = jnp.concatenate([s_avg, s_max], axis=1)               # (B, 2, T)
    s = jax.lax.conv_general_dilated(
        scat, params["sa_w"], window_strides=(1,), padding=((3, 3),),
        dimension_numbers=("NCH", "OIH", "NCH"))                 # (B, 1, T)
    return y * jax.nn.sigmoid(s)


def init_params(key, inplanes, planes):
    ks = jax.random.split(key, 7)
    R = planes // 16
    return {
        "conv_w": 0.1 * jax.random.normal(ks[0], (planes, inplanes, KSIZE), jnp.float32),
        "conv_b": 0.1 * jax.random.normal(ks[1], (planes,), jnp.float32),
        "bn_gamma": 1.0 + 0.1 * jax.random.normal(ks[2], (planes,), jnp.float32),
        "bn_beta": 0.1 * jax.random.normal(ks[3], (planes,), jnp.float32),
        "fc1_w": 0.1 * jax.random.normal(ks[4], (R, planes), jnp.float32),
        "fc2_w": 0.1 * jax.random.normal(ks[5], (planes, R), jnp.float32),
        "sa_w": 0.1 * jax.random.normal(ks[6], (1, 2, 7), jnp.float32),
    }


if __name__ == "__main__":
    key = jax.random.PRNGKey(0)
    kx, kp = jax.random.split(key)

    B, inplanes, planes = 4, 4, 32      # planes must be >= 16 (planes // 16 in fc1)
    L = 1920                            # -> T = 128 (lane-dense), grid = (2,) per pass
    x = jax.random.normal(kx, (B, inplanes, L), jnp.float32)
    params = init_params(kp, inplanes, planes)

    out = jax.block_until_ready(baseblock3_forward(x, params))
    ref = jax.block_until_ready(reference_forward(x, params))

    assert out.shape == (B, planes, L // STRIDE), out.shape
    # conv + intermediate run in bf16 (f32 accumulation) -> bf16-appropriate tol.
    np.testing.assert_allclose(np.asarray(out), np.asarray(ref), rtol=2e-2, atol=2e-2)
    print("KERNEL_OK")
</pallas_src>

<mosaic_0001>
module attributes {stable_mosaic.version = 11 : i64} {
  func.func @conv_stats_kernel(%arg0: i32, %arg1: memref<2x64x128xbf16, #tpu.memory_space<vmem>>, %arg2: memref<32x64xbf16, #tpu.memory_space<vmem>>, %arg3: memref<2x32x128xbf16, #tpu.memory_space<vmem>>, %arg4: memref<1x32x2xf32, #tpu.memory_space<vmem>>) attributes {dimension_semantics = [#tpu.dimension_semantics<parallel>], iteration_bounds = array<i64: 2>, scalar_prefetch = 0 : i64, scratch_operands = 0 : i64, tpu.core_type = #tpu.core_type<tc>, window_params = [{transform_indices = @transform_0, window_bounds = array<i64: 2, 64, 128>}, {pipeline_mode = #tpu.pipeline_mode<synchronous>, transform_indices = @transform_1, window_bounds = array<i64: 32, 64>}, {transform_indices = @transform_2, window_bounds = array<i64: 2, 32, 128>}, {transform_indices = @transform_3, window_bounds = array<i64: 1, 32, 2>}]} {
    %cst = arith.constant 0.000000e+00 : f32
    %0 = vector.broadcast %cst : f32 to vector<32x1xf32>
    %cst_0 = arith.constant 0.000000e+00 : f32
    %1 = vector.broadcast %cst_0 : f32 to vector<32x1xf32>
    %c0 = arith.constant 0 : index
    %c0_1 = arith.constant 0 : index
    %2 = vector.load %arg2[%c0, %c0_1] : memref<32x64xbf16, #tpu.memory_space<vmem>>, vector<32x64xbf16>
    %c0_2 = arith.constant 0 : index
    %c0_3 = arith.constant 0 : index
    %c0_4 = arith.constant 0 : index
    %3 = vector.load %arg1[%c0_2, %c0_3, %c0_4] : memref<2x64x128xbf16, #tpu.memory_space<vmem>>, vector<1x64x128xbf16>
    %4 = vector.shape_cast %3 : vector<1x64x128xbf16> to vector<64x128xbf16>
    %cst_5 = arith.constant dense<0.000000e+00> : vector<32x128xf32>
    %5 = tpu.matmul %2, %4, %cst_5 {dimension_numbers = #tpu.dot_dimension_numbers<[1], [0], [0], [1], [0, 0, 1, 1], [], []>} : vector<32x64xbf16>, vector<64x128xbf16>, vector<32x128xf32> -> vector<32x128xf32>
    %6 = arith.truncf %5 : vector<32x128xf32> to vector<32x128xbf16>
    %c0_6 = arith.constant 0 : index
    %c0_7 = arith.constant 0 : index
    %c0_8 = arith.constant 0 : index
    %7 = vector.load %arg3[%c0_6, %c0_7, %c0_8] : memref<2x32x128xbf16, #tpu.memory_space<vmem>>, vector<1x32x128xbf16>
    %8 = vector.shape_cast %7 : vector<1x32x128xbf16> to vector<32x128xbf16>
    %9 = vector.shape_cast %6 : vector<32x128xbf16> to vector<1x32x128xbf16>
    tpu.vector_store %arg3[%c0_6, %c0_7, %c0_8], %9 {strides = array<i32>} : memref<2x32x128xbf16, #tpu.memory_space<vmem>>, vector<1x32x128xbf16>,
    %cst_9 = arith.constant dense<0.000000e+00> : vector<32xf32>
    %10 = vector.multi_reduction <add>, %5, %cst_9 [1] : vector<32x128xf32> to vector<32xf32>
    %11 = vector.shape_cast %10 : vector<32xf32> to vector<32x1xf32>
    %12 = arith.addf %0, %11 : vector<32x1xf32>
    %13 = arith.mulf %5, %5 : vector<32x128xf32>
    %cst_10 = arith.constant dense<0.000000e+00> : vector<32xf32>
    %14 = vector.multi_reduction <add>, %13, %cst_10 [1] : vector<32x128xf32> to vector<32xf32>
    %15 = vector.shape_cast %14 : vector<32xf32> to vector<32x1xf32>
    %16 = arith.addf %1, %15 : vector<32x1xf32>
    %c0_11 = arith.constant 0 : index
    %c0_12 = arith.constant 0 : index
    %17 = vector.load %arg2[%c0_11, %c0_12] : memref<32x64xbf16, #tpu.memory_space<vmem>>, vector<32x64xbf16>
    %c1 = arith.constant 1 : index
    %c0_13 = arith.constant 0 : index
    %c0_14 = arith.constant 0 : index
    %18 = vector.load %arg1[%c1, %c0_13, %c0_14] : memref<2x64x128xbf16, #tpu.memory_space<vmem>>, vector<1x64x128xbf16>
    %19 = vector.shape_cast %18 : vector<1x64x128xbf16> to vector<64x128xbf16>
    %cst_15 = arith.constant dense<0.000000e+00> : vector<32x128xf32>
    %20 = tpu.matmul %17, %19, %cst_15 {dimension_numbers = #tpu.dot_dimension_numbers<[1], [0], [0], [1], [0, 0, 1, 1], [], []>} : vector<32x64xbf16>, vector<64x128xbf16>, vector<32x128xf32> -> vector<32x128xf32>
    %21 = arith.truncf %20 : vector<32x128xf32> to vector<32x128xbf16>
    %c1_16 = arith.constant 1 : index
    %c0_17 = arith.constant 0 : index
    %c0_18 = arith.constant 0 : index
    %22 = vector.load %arg3[%c1_16, %c0_17, %c0_18] : memref<2x32x128xbf16, #tpu.memory_space<vmem>>, vector<1x32x128xbf16>
    %23 = vector.shape_cast %22 : vector<1x32x128xbf16> to vector<32x128xbf16>
    %24 = vector.shape_cast %21 : vector<32x128xbf16> to vector<1x32x128xbf16>
    tpu.vector_store %arg3[%c1_16, %c0_17, %c0_18], %24 {strides = array<i32>} : memref<2x32x128xbf16, #tpu.memory_space<vmem>>, vector<1x32x128xbf16>,
    %cst_19 = arith.constant dense<0.000000e+00> : vector<32xf32>
    %25 = vector.multi_reduction <add>, %20, %cst_19 [1] : vector<32x128xf32> to vector<32xf32>
    %26 = vector.shape_cast %25 : vector<32xf32> to vector<32x1xf32>
    %27 = arith.addf %12, %26 : vector<32x1xf32>
    %28 = arith.mulf %20, %20 : vector<32x128xf32>
    %cst_20 = arith.constant dense<0.000000e+00> : vector<32xf32>
    %29 = vector.multi_reduction <add>, %28, %cst_20 [1] : vector<32x128xf32> to vector<32xf32>
    %30 = vector.shape_cast %29 : vector<32xf32> to vector<32x1xf32>
    %31 = arith.addf %16, %30 : vector<32x1xf32>
    %c0_21 = arith.constant 0 : index
    %c0_22 = arith.constant 0 : index
    %c0_23 = arith.constant 0 : index
    %32 = vector.load %arg4[%c0_21, %c0_22, %c0_23] : memref<1x32x2xf32, #tpu.memory_space<vmem>>, vector<1x32x1xf32>
    %33 = vector.shape_cast %32 : vector<1x32x1xf32> to vector<32x1xf32>
    %34 = vector.shape_cast %27 : vector<32x1xf32> to vector<1x32x1xf32>
    tpu.vector_store %arg4[%c0_21, %c0_22, %c0_23], %34 {strides = array<i32>} : memref<1x32x2xf32, #tpu.memory_space<vmem>>, vector<1x32x1xf32>,
    %c0_24 = arith.constant 0 : index
    %c0_25 = arith.constant 0 : index
    %c1_26 = arith.constant 1 : index
    %35 = vector.load %arg4[%c0_24, %c0_25, %c1_26] : memref<1x32x2xf32, #tpu.memory_space<vmem>>, vector<1x32x1xf32>
    %36 = vector.shape_cast %35 : vector<1x32x1xf32> to vector<32x1xf32>
    %37 = vector.shape_cast %31 : vector<32x1xf32> to vector<1x32x1xf32>
    tpu.vector_store %arg4[%c0_24, %c0_25, %c1_26], %37 {strides = array<i32>} : memref<1x32x2xf32, #tpu.memory_space<vmem>>, vector<1x32x1xf32>,
    return
  }
  func.func @transform_0(%arg0: i32) -> (i32, i32, i32) {
    %c0_i32 = arith.constant 0 : i32
    %c0_i32_0 = arith.constant 0 : i32
    %c0_i32_1 = arith.constant 0 : i32
    return %arg0, %c0_i32, %c0_i32_0 : i32, i32, i32
  }
  func.func @transform_1(%arg0: i32) -> (i32, i32) {
    %c0_i32 = arith.constant 0 : i32
    %c0_i32_0 = arith.constant 0 : i32
    %c0_i32_1 = arith.constant 0 : i32
    return %c0_i32, %c0_i32_0 : i32, i32
  }
  func.func @transform_2(%arg0: i32) -> (i32, i32, i32) {
    %c0_i32 = arith.constant 0 : i32
    %c0_i32_0 = arith.constant 0 : i32
    %c0_i32_1 = arith.constant 0 : i32
    return %arg0, %c0_i32, %c0_i32_0 : i32, i32, i32
  }
  func.func @transform_3(%arg0: i32) -> (i32, i32, i32) {
    %c0_i32 = arith.constant 0 : i32
    %c0_i32_0 = arith.constant 0 : i32
    %c0_i32_1 = arith.constant 0 : i32
    return %arg0, %c0_i32, %c0_i32_0 : i32, i32, i32
  }
}

</mosaic_0001>

<llo_original>
// kernel: tpu_custom_call.1
$region0: #{tpu_custom_call.1}
  #allocation0 [shape = 'u32[]', space=smem, size = 0x4, offset = 0x4, fixed_abs, tag = 'smem constant byte address 0x4 - core index']
  #allocation1 [shape = 'u32[144,128]{1,0:T(1,128)}', space=vmem, size = 0x12000, scoped, tag = 'internal scratch']
  %s0 = inlined_call_operand.hbm [shape: bf16[4,64,128], index: 0, kind: input, shape index: {}]
  %s1 = inlined_call_operand.hbm [shape: bf16[32,64], index: 1, kind: input, shape index: {}]
  %s2 = inlined_call_operand.hbm [shape: bf16[4,32,128], index: 2, kind: output, shape index: {0}]
  %s3 = inlined_call_operand.vmem [shape: f32[2,32,2], index: 3, kind: output, shape index: {1}]
  %4 = xla_tuple %s2, %s3
  %s5 = sld [smem:[#allocation0]]
  $region57: #{tpu_custom_call.1} parent=0
    _
  %s7 = ssub.s32 1, %s5
  %s8 = scalar_select 0, %s7, %s5
  $region1: #{tpu_custom_call.1} parent=0
    #allocation2 [shape = 'u8[65536]{0}', space=vmem, size = 0x10000, scoped, tag = 'input window, operand 0']
    #allocation3 [shape = 's32[2]{0}', space=sflag, size = 0x8, scoped, tag = 'scoped memory for tpu_custom_call.1']
    #allocation4 [shape = 's32[2]{0}', space=sflag, size = 0x8, scoped, tag = 'scoped memory for tpu_custom_call.1']
    #allocation5 [shape = 'u8[8192]{0}', space=vmem, size = 0x2000, scoped, tag = 'input window, operand 1, single buffered']
    #allocation6 [shape = 's32[1]{0}', space=sflag, size = 0x4, scoped, tag = 'scoped memory for tpu_custom_call.1']
    #allocation7 [shape = 'u8[32768]{0}', space=vmem, size = 0x8000, scoped, tag = 'output window, operand 0']
    %9 = vsyncpa [#allocation3], 0
    %s10 = scalar_lea.sflag [#allocation3], 1
    %11 = vsyncpa %s10, 0
    %12 = vsyncpa [#allocation6], 0
    %13 = vsyncpa [#allocation4], 0
    %s14 = scalar_lea.sflag [#allocation4], 1
    %15 = vsyncpa %s14, 0
    loop: start=0, step=1, limit=4
    $region2: #{tpu_custom_call.1} parent=1 // loop_pre_header
      _
    $region3: #{tpu_custom_call.1} parent=1 // loop_header
      %s17 = sphi 0, %s21
      %p18 = scmp.ge.s32.totalorder %s17, 4
      %s27 = sphi 0, %s29
      %s30 = sphi 0, %s27
      %s31 = sphi 0, %s30
      %s47 = sphi 0, %s31
      %s51 = sphi 0, %s51
      %s53 = sphi 0, %s51
      %s54 = sphi 0, %s53
      %s68 = sphi 0, %s54
      %s74 = sphi 0, %s76
      %s77 = sphi 0, %s74
      %s78 = sphi 0, %s77
      %s94 = sphi 0, %s78
      %s100 = sphi 0, %s102
      %s103 = sphi 0, %s100
      %s104 = sphi 0, %s103
      %s120 = sphi 0, %s104
    $region4: #{tpu_custom_call.1} parent=1 // loop_header_branch
      %20 = sbr.rel (%p18) target = $region8
    $region5: #{tpu_custom_call.1} parent=1 // loop_body
      %s22 = ssub.s32 %s17, 1
      %s23 = ssub.s32 %s17, 2
      %s24 = sadd.s32 %s17, 1
      %s25 = ssub.s32 %s17, %s24
      %p26 = scmp.eq.s32.totalorder %s25, 0
      %s28 = sadd.s32 %s27, 1
      %s29 = scalar_select %p26, %s27, %s28
      %p32 = pneg %p26
      %p33 = scmp.eq.s32.totalorder %s17, 1
      %p34 = por %p32, %p33
      %p35 = scmp.ne.s32.totalorder %s27, %s30
      %p36 = scmp.eq.s32.totalorder %s17, 0
      %p37 = por %p35, %p36
      %p38 = scmp.ne.s32.totalorder %s27, %s30
      %p39 = scmp.eq.s32.totalorder %s22, 1
      %p40 = por %p38, %p39
      %p41 = scmp.ne.s32.totalorder %s30, %s31
      %p42 = scmp.eq.s32.totalorder %s22, 0
      %p43 = por %p41, %p42
      %p44 = scmp.ne.s32.totalorder %s30, %s31
      %p45 = scmp.eq.s32.totalorder %s23, 1
      %p46 = por %p44, %p45
      %p48 = scmp.ne.s32.totalorder %s31, %s47
      %p49 = scmp.eq.s32.totalorder %s23, 0
      %p50 = por %p48, %p49
      %s52 = sadd.s32 %s51, 1
      %p55 = scmp.eq.s32.totalorder %s17, 1
      %p56 = scmp.ne.s32.totalorder %s51, %s53
      %p57 = scmp.eq.s32.totalorder %s17, 0
      %p58 = por %p56, %p57
      %p59 = scmp.ne.s32.totalorder %s51, %s53
      %p60 = scmp.eq.s32.totalorder %s22, 1
      %p61 = por %p59, %p60
      %p62 = scmp.ne.s32.totalorder %s53, %s54
      %p63 = scmp.eq.s32.totalorder %s22, 0
      %p64 = por %p62, %p63
      %p65 = scmp.ne.s32.totalorder %s53, %s54
      %p66 = scmp.eq.s32.totalorder %s23, 1
      %p67 = por %p65, %p66
      %p69 = scmp.ne.s32.totalorder %s54, %s68
      %p70 = scmp.eq.s32.totalorder %s23, 0
      %p71 = por %p69, %p70
      %s72 = ssub.s32 %s17, %s24
      %p73 = scmp.eq.s32.totalorder %s72, 0
      %s75 = sadd.s32 %s74, 1
      %s76 = scalar_select %p73, %s74, %s75
      %p79 = pneg %p73
      %p80 = scmp.eq.s32.totalorder %s17, 1
      %p81 = por %p79, %p80
      %p82 = scmp.ne.s32.totalorder %s74, %s77
      %p83 = scmp.eq.s32.totalorder %s17, 0
      %p84 = por %p82, %p83
      %p85 = scmp.ne.s32.totalorder %s74, %s77
      %p86 = scmp.eq.s32.totalorder %s22, 1
      %p87 = por %p85, %p86
      %p88 = scmp.ne.s32.totalorder %s77, %s78
      %p89 = scmp.eq.s32.totalorder %s22, 0
      %p90 = por %p88, %p89
      %p91 = scmp.ne.s32.totalorder %s77, %s78
      %p92 = scmp.eq.s32.totalorder %s23, 1
      %p93 = por %p91, %p92
      %p95 = scmp.ne.s32.totalorder %s78, %s94
      %p96 = scmp.eq.s32.totalorder %s23, 0
      %p97 = por %p95, %p96
      %s98 = ssub.s32 %s17, %s24
      %p99 = scmp.eq.s32.totalorder %s98, 0
      %s101 = sadd.s32 %s100, 1
      %s102 = scalar_select %p99, %s100, %s101
      %p105 = pneg %p99
      %p106 = scmp.eq.s32.totalorder %s17, 1
      %p107 = por %p105, %p106
      %p108 = scmp.ne.s32.totalorder %s100, %s103
      %p109 = scmp.eq.s32.totalorder %s17, 0
      %p110 = por %p108, %p109
      %p111 = scmp.ne.s32.totalorder %s100, %s103
      %p112 = scmp.eq.s32.totalorder %s22, 1
      %p113 = por %p111, %p112
      %p114 = scmp.ne.s32.totalorder %s103, %s104
      %p115 = scmp.eq.s32.totalorder %s22, 0
      %p116 = por %p114, %p115
      %p117 = scmp.ne.s32.totalorder %s103, %s104
      %p118 = scmp.eq.s32.totalorder %s23, 1
      %p119 = por %p117, %p118
      %p121 = scmp.ne.s32.totalorder %s104, %s120
      %p122 = scmp.eq.s32.totalorder %s23, 0
      %p123 = por %p121, %p122
      %p124 = scmp.le.s32.totalorder 1, %s17
      %p125 = scmp.lt.s32.totalorder %s17, 3
      %p126 = pnand %p124, %p125
      %p127 = pneg %p126
      // Predicated region
      $region9: #{tpu_custom_call.1} parent=5 // pred_check
        _
      $region10: #{tpu_custom_call.1} parent=5 // pred_check_branch
        %129 = sbr.rel (%p126) target = $region12
      $region11: #{tpu_custom_call.1} parent=5 // pred_region
        %s130 = ssub.s32 %s17, 1
        // Predicated region
        $region13: #{tpu_custom_call.1} parent=11 // pred_check
          %p131 = pneg %p64
        $region14: #{tpu_custom_call.1} parent=11 // pred_check_branch
          %133 = sbr.rel (%p131) target = $region16
        $region15: #{tpu_custom_call.1} parent=11 // pred_region
          %s135 = ssub.s32 256, 256
          %136 = vsyncadd [#allocation6], %s135
          %s137 = sshll.u32 [#allocation5], 4
          %s138 = int_to_ptr.vmem [resolvable:$true] %s137
          %143 = dma.hbm_to_vmem [thread:$0]  %s1, 256, %s138, [#allocation6], 64, 64, 4
        $region16: #{tpu_custom_call.1} parent=11 // pred_fallthru
          _
      $region12: #{tpu_custom_call.1} parent=5 // pred_fallthru
        _
      %p144 = scmp.lt.s32.totalorder %s17, 2
      // Predicated region
      $region17: #{tpu_custom_call.1} parent=5 // pred_check
        %p145 = pneg %p144
      $region18: #{tpu_custom_call.1} parent=5 // pred_check_branch
        %147 = sbr.rel (%p145) target = $region20
      $region19: #{tpu_custom_call.1} parent=5 // pred_region
        // Predicated region
        $region21: #{tpu_custom_call.1} parent=19 // pred_check
          %p148 = pneg %p37
        $region22: #{tpu_custom_call.1} parent=19 // pred_check_branch
          %150 = sbr.rel (%p148) target = $region24
        $region23: #{tpu_custom_call.1} parent=19 // pred_region
          %s151 = sand.u32 %s27, 1
          %s152 = scalar_lea.sflag [#allocation3], %s151
          %s153 = sand.u32 %s27, 1
          %s154 = smul.addr %s153, 64
          %s155 = scalar_lea.vmem [#allocation2], %s154
          %s156 = smul.u32 2, %s17
          %s158 = ssub.s32 1024, 1024
          %159 = vsyncadd %s152, %s158
          %s160 = smul.addr %s156, 8
          %s161 = smul.addr %s160, 64
          %s162 = scalar_lea.hbm %s0, %s161
          %s163 = sshll.u32 %s155, 4
          %s164 = int_to_ptr.vmem [resolvable:$true] %s163
          %169 = dma.hbm_to_vmem [thread:$0]  %s162, 1024, %s164, %s152, 64, 64, 4
        $region24: #{tpu_custom_call.1} parent=19 // pred_fallthru
          _
      $region20: #{tpu_custom_call.1} parent=5 // pred_fallthru
        _
      %p170 = scmp.le.s32.totalorder 1, %s17
      %p171 = scmp.lt.s32.totalorder %s17, 3
      %p172 = pnand %p170, %p171
      %p173 = pneg %p172
      // Predicated region
      $region25: #{tpu_custom_call.1} parent=5 // pred_check
        _
      $region26: #{tpu_custom_call.1} parent=5 // pred_check_branch
        %175 = sbr.rel (%p172) target = $region28
      $region27: #{tpu_custom_call.1} parent=5 // pred_region
        %s176 = ssub.s32 %s17, 1
        %s177 = sand.u32 %s30, 1
        %s178 = scalar_lea.sflag [#allocation3], %s177
        %s179 = sand.u32 %s30, 1
        %s180 = smul.addr %s179, 64
        %s181 = scalar_lea.vmem [#allocation2], %s180
        // Predicated region
        $region29: #{tpu_custom_call.1} parent=27 // pred_check
          %p182 = pneg %p43
        $region30: #{tpu_custom_call.1} parent=27 // pred_check_branch
          %184 = sbr.rel (%p182) target = $region32
        $region31: #{tpu_custom_call.1} parent=27 // pred_region
          %185 = dma.done %s178, 1024
        $region32: #{tpu_custom_call.1} parent=27 // pred_fallthru
          _
        // Predicated region
        $region33: #{tpu_custom_call.1} parent=27 // pred_check
          %p186 = pneg %p64
        $region34: #{tpu_custom_call.1} parent=27 // pred_check_branch
          %188 = sbr.rel (%p186) target = $region36
        $region35: #{tpu_custom_call.1} parent=27 // pred_region
          %189 = dma.done [#allocation6], 256
        $region36: #{tpu_custom_call.1} parent=27 // pred_fallthru
          _
        %s190 = sand.u32 %s30, 1
        %s191 = scalar_lea.sflag [#allocation3], %s190
        %s192 = sand.u32 %s30, 1
        %s193 = smul.addr %s192, 64
        %s194 = scalar_lea.vmem [#allocation2], %s193
        %p195 = pneg %p43
        %p196 = pneg %p40
        %p197 = pneg %p64
        %p198 = pneg %p61
        %p199 = pneg %p90
        %p200 = pneg %p87
        %s201 = sand.u32 %s77, 1
        %s202 = scalar_lea.sflag [#allocation4], %s201
        %s203 = sand.u32 %s77, 1
        %s204 = smul.addr %s203, 32
        %s205 = scalar_lea.vmem [#allocation7], %s204
        %p206 = pneg %p116
        %p207 = pneg %p113
        %p208 = scmp.lt.s32.totalorder %s22, 1
        %s209 = scalar_select %p208, %s22, 1
        %s210 = smul.addr %s209, 4
        %s211 = smul.addr %s210, 8
        %s212 = scalar_lea.vmem %s3, %s211
        %s213 = smul.u32 2, %s22
        %s214 = smul.u32 2, %s22
        %p215 = scmp.lt.s32.totalorder %s22, 1
        %s216 = scalar_select %p215, %s22, 1
        %s217 = smul.addr %s216, 4
        %s218 = smul.addr %s217, 8
        %s219 = scalar_lea.vmem %s3, %s218
        %v221 = vld [vmem:[#allocation5] sm:$0xf]
        %v222 = vld [vmem:[#allocation5 + $0x4] sm:$0xf]
        %v223 = vld [vmem:[#allocation5 + $0x8] sm:$0xf]
        %v224 = vld [vmem:[#allocation5 + $0xc] sm:$0xf]
        %v225 = vld [vmem:[%s181] sm:$0xf]
        %v226 = vld [vmem:[%s181 + $0x4] sm:$0xf]
        %v227 = vld [vmem:[%s181 + $0x8] sm:$0xf]
        %v228 = vld [vmem:[%s181 + $0xc] sm:$0xf]
        %v229 = vld [vmem:[%s181 + $0x10] sm:$0xf]
        %v230 = vld [vmem:[%s181 + $0x14] sm:$0xf]
        %v231 = vld [vmem:[%s181 + $0x18] sm:$0xf]
        %v232 = vld [vmem:[%s181 + $0x1c] sm:$0xf]
        %v237 = vunpack.c.l.b16 %v221
        %v238 = vunpack.c.l.b16 %v222
        %v239 = vunpack.c.l.b16 %v223
        %v240 = vunpack.c.l.b16 %v224
        %v241 = vpack.c.b16 %v238, %v237
        %v242 = vpack.c.b16 %v240, %v239
        %v251 = vunpack.c.l.b16 %v225
        %v252 = vunpack.c.l.b16 %v226
        %v253 = vunpack.c.l.b16 %v227
        %v254 = vunpack.c.l.b16 %v228
        %v255 = vunpack.c.l.b16 %v229
        %v256 = vunpack.c.l.b16 %v230
        %v257 = vunpack.c.l.b16 %v231
        %v258 = vunpack.c.l.b16 %v232
        %v259 = vpack.c.b16 %v252, %v251
        %v260 = vpack.c.b16 %v254, %v253
        %v261 = vpack.c.b16 %v256, %v255
        %v262 = vpack.c.b16 %v258, %v257
        %vm267 = vcmask 523264
        %v269 = vsel %vm267, %v241, 0
        %v272 = vsel %vm267, %v242, 0
        %274 = vmatprep.subr.bf16.mxu0 0
        %275 = vmatpush1.bf16.msra.mxu0 %v259
        %276 = vmatprep.subr.bf16.mxu0 0
        %277 = vmatpush1.bf16.msra.mxu0 %v260
        %278 = vmatprep.subr.bf16.mxu0 0
        %279 = vmatpush1.bf16.msra.mxu0 %v261
        %280 = vmatprep.subr.bf16.mxu0 0
        %281 = vmatpush1.bf16.msra.mxu0 %v262
        %282 = vmatprep.subr.bf16.mxu0 0
        %283 = vmatpush1.bf16.msra.mxu0 0
        %284 = vmatprep.subr.bf16.mxu0 0
        %285 = vmatpush1.bf16.msra.mxu0 0
        %286 = vmatprep.subr.bf16.mxu0 0
        %287 = vmatpush1.bf16.msra.mxu0 0
        %288 = vmatprep.subr.bf16.mxu0 0
        %289 = vmatpush1.bf16.msra.mxu0 0
        %290 = vmatprep.subr.bf16.mxu0 0
        %291 = vmatpush1.bf16.msra.mxu0 0
        %292 = vmatprep.subr.bf16.mxu0 0
        %293 = vmatpush1.bf16.msra.mxu0 0
        %294 = vmatprep.subr.bf16.mxu0 0
        %295 = vmatpush1.bf16.msra.mxu0 0
        %296 = vmatprep.subr.bf16.mxu0 0
        %297 = vmatpush1.bf16.msra.mxu0 0
        %298 = vmatprep.subr.bf16.mxu0 0
        %299 = vmatpush1.bf16.msra.mxu0 0
        %300 = vmatprep.subr.bf16.mxu0 0
        %301 = vmatpush1.bf16.msra.mxu0 0
        %302 = vmatprep.subr.bf16.mxu0 0
        %303 = vmatpush1.bf16.msra.mxu0 0
        %304 = vmatprep.subr.bf16.mxu0 0
        %305 = vmatpush1.bf16.msra.mxu0 0
        %306 = vmatprep.mubr.bf16.mxu0 0
        %307 = vmatmul.mubr.bf16.gmra.mrb[0].mxu0 %v269
        %v308 = vpop.f32.mrb[0].mxu0
        %v309 = vadd.f32 0.0, %v308
        %v310 = vpop.f32.mrb[0].mxu0
        %v311 = vpop.f32.mrb[0].mxu0
        %v312 = vadd.f32 0.0, %v311
        %v313 = vpop.f32.mrb[0].mxu0
        %314 = vmatprep.mubr.bf16.mxu0 0
        %315 = vmatmul.mubr.bf16.gmra.mrb[0].mxu0 %v272
        %v316 = vpop.f32.mrb[0].mxu0
        %v317 = vadd.f32 0.0, %v316
        %v318 = vpop.f32.mrb[0].mxu0
        %v319 = vpop.f32.mrb[0].mxu0
        %v320 = vadd.f32 0.0, %v319
        %v321 = vpop.f32.mrb[0].mxu0
        %322 = vdwg.mxu0
        %v323 = vpack.c.bf16 %v312, %v309
        %v324 = vpack.c.bf16 %v320, %v317
        %v327 = vunpack.c.l.b16 %v323
        %v328 = vunpack.c.h.b16 %v323
        %v329 = vunpack.c.l.b16 %v324
        %v330 = vunpack.c.h.b16 %v324
        %v331 = vpack.c.b16 %v327, %v327
        %v332 = vpack.c.b16 %v328, %v328
        %v333 = vpack.c.b16 %v329, %v329
        %v334 = vpack.c.b16 %v330, %v330
        %339 = vst [vmem:[%s205] sm:$0xf] %v331
        %340 = vst [vmem:[%s205 + $0x4] sm:$0xf] %v332
        %341 = vst [vmem:[%s205 + $0x8] sm:$0xf] %v333
        %342 = vst [vmem:[%s205 + $0xc] sm:$0xf] %v334
        %343 = vadd.xlane.f32.xlu0 %v309
        %v344 = vpop.xlane.xlu0 %343
        %345 = vadd.xlane.f32.xlu0 %v312
        %v346 = vpop.xlane.xlu0 %345
        %347 = vadd.xlane.f32.xlu0 %v317
        %v348 = vpop.xlane.xlu0 %347
        %349 = vadd.xlane.f32.xlu0 %v320
        %v350 = vpop.xlane.xlu0 %349
        %v351 = vadd.f32 %v344, 0.0
        %v352 = vadd.f32 %v346, 0.0
        %v353 = vadd.f32 %v348, 0.0
        %v354 = vadd.f32 %v350, 0.0
        %v355 = vmul.f32 %v309, %v309
        %v356 = vmul.f32 %v312, %v312
        %v357 = vmul.f32 %v317, %v317
        %v358 = vmul.f32 %v320, %v320
        %359 = vadd.xlane.f32.xlu0 %v355
        %v360 = vpop.xlane.xlu0 %359
        %361 = vadd.xlane.f32.xlu0 %v356
        %v362 = vpop.xlane.xlu0 %361
        %363 = vadd.xlane.f32.xlu0 %v357
        %v364 = vpop.xlane.xlu0 %363
        %365 = vadd.xlane.f32.xlu0 %v358
        %v366 = vpop.xlane.xlu0 %365
        %v367 = vadd.f32 %v360, 0.0
        %v368 = vadd.f32 %v362, 0.0
        %v369 = vadd.f32 %v364, 0.0
        %v370 = vadd.f32 %v366, 0.0
        %v371 = vld [vmem:[#allocation5] sm:$0xf]
        %v372 = vld [vmem:[#allocation5 + $0x4] sm:$0xf]
        %v373 = vld [vmem:[#allocation5 + $0x8] sm:$0xf]
        %v374 = vld [vmem:[#allocation5 + $0xc] sm:$0xf]
        %s375 = scalar_lea.vmem %s181, 32 [#allocation2]
        %v376 = vld [vmem:[%s375] sm:$0xf]
        %v377 = vld [vmem:[%s375 + $0x4] sm:$0xf]
        %v378 = vld [vmem:[%s375 + $0x8] sm:$0xf]
        %v379 = vld [vmem:[%s375 + $0xc] sm:$0xf]
        %v380 = vld [vmem:[%s375 + $0x10] sm:$0xf]
        %v381 = vld [vmem:[%s375 + $0x14] sm:$0xf]
        %v382 = vld [vmem:[%s375 + $0x18] sm:$0xf]
        %v383 = vld [vmem:[%s375 + $0x1c] sm:$0xf]
        %v388 = vunpack.c.l.b16 %v371
        %v389 = vunpack.c.l.b16 %v372
        %v390 = vunpack.c.l.b16 %v373
        %v391 = vunpack.c.l.b16 %v374
        %v392 = vpack.c.b16 %v389, %v388
        %v393 = vpack.c.b16 %v391, %v390
        %v402 = vunpack.c.l.b16 %v376
        %v403 = vunpack.c.l.b16 %v377
        %v404 = vunpack.c.l.b16 %v378
        %v405 = vunpack.c.l.b16 %v379
        %v406 = vunpack.c.l.b16 %v380
        %v407 = vunpack.c.l.b16 %v381
        %v408 = vunpack.c.l.b16 %v382
        %v409 = vunpack.c.l.b16 %v383
        %v410 = vpack.c.b16 %v403, %v402
        %v411 = vpack.c.b16 %v405, %v404
        %v412 = vpack.c.b16 %v407, %v406
        %v413 = vpack.c.b16 %v409, %v408
        %v419 = vsel %vm267, %v392, 0
        %v422 = vsel %vm267, %v393, 0
        %424 = vmatprep.subr.bf16.mxu0 0
        %425 = vmatpush1.bf16.msra.mxu0 %v410
        %426 = vmatprep.subr.bf16.mxu0 0
        %427 = vmatpush1.bf16.msra.mxu0 %v411
        %428 = vmatprep.subr.bf16.mxu0 0
        %429 = vmatpush1.bf16.msra.mxu0 %v412
        %430 = vmatprep.subr.bf16.mxu0 0
        %431 = vmatpush1.bf16.msra.mxu0 %v413
        %432 = vmatprep.subr.bf16.mxu0 0
        %433 = vmatpush1.bf16.msra.mxu0 0
        %434 = vmatprep.subr.bf16.mxu0 0
        %435 = vmatpush1.bf16.msra.mxu0 0
        %436 = vmatprep.subr.bf16.mxu0 0
        %437 = vmatpush1.bf16.msra.mxu0 0
        %438 = vmatprep.subr.bf16.mxu0 0
        %439 = vmatpush1.bf16.msra.mxu0 0
        %440 = vmatprep.subr.bf16.mxu0 0
        %441 = vmatpush1.bf16.msra.mxu0 0
        %442 = vmatprep.subr.bf16.mxu0 0
        %443 = vmatpush1.bf16.msra.mxu0 0
        %444 = vmatprep.subr.bf16.mxu0 0
        %445 = vmatpush1.bf16.msra.mxu0 0
        %446 = vmatprep.subr.bf16.mxu0 0
        %447 = vmatpush1.bf16.msra.mxu0 0
        %448 = vmatprep.subr.bf16.mxu0 0
        %449 = vmatpush1.bf16.msra.mxu0 0
        %450 = vmatprep.subr.bf16.mxu0 0
        %451 = vmatpush1.bf16.msra.mxu0 0
        %452 = vmatprep.subr.bf16.mxu0 0
        %453 = vmatpush1.bf16.msra.mxu0 0
        %454 = vmatprep.subr.bf16.mxu0 0
        %455 = vmatpush1.bf16.msra.mxu0 0
        %456 = vmatprep.mubr.bf16.mxu0 0
        %457 = vmatmul.mubr.bf16.gmra.mrb[0].mxu0 %v419
        %v458 = vpop.f32.mrb[0].mxu0
        %v459 = vadd.f32 0.0, %v458
        %v460 = vpop.f32.mrb[0].mxu0
        %v461 = vpop.f32.mrb[0].mxu0
        %v462 = vadd.f32 0.0, %v461
        %v463 = vpop.f32.mrb[0].mxu0
        %464 = vmatprep.mubr.bf16.mxu0 0
        %465 = vmatmul.mubr.bf16.gmra.mrb[0].mxu0 %v422
        %v466 = vpop.f32.mrb[0].mxu0
        %v467 = vadd.f32 0.0, %v466
        %v468 = vpop.f32.mrb[0].mxu0
        %v469 = vpop.f32.mrb[0].mxu0
        %v470 = vadd.f32 0.0, %v469
        %v471 = vpop.f32.mrb[0].mxu0
        %472 = vdwg.mxu0
        %v473 = vpack.c.bf16 %v462, %v459
        %v474 = vpack.c.bf16 %v470, %v467
        %v477 = vunpack.c.l.b16 %v473
        %v478 = vunpack.c.h.b16 %v473
        %v479 = vunpack.c.l.b16 %v474
        %v480 = vunpack.c.h.b16 %v474
        %v481 = vpack.c.b16 %v477, %v477
        %v482 = vpack.c.b16 %v478, %v478
        %v483 = vpack.c.b16 %v479, %v479
        %v484 = vpack.c.b16 %v480, %v480
        %s489 = scalar_lea.vmem %s205, 16 [#allocation7]
        %490 = vst [vmem:[%s489] sm:$0xf] %v481
        %491 = vst [vmem:[%s489 + $0x4] sm:$0xf] %v482
        %492 = vst [vmem:[%s489 + $0x8] sm:$0xf] %v483
        %493 = vst [vmem:[%s489 + $0xc] sm:$0xf] %v484
        %494 = vadd.xlane.f32.xlu0 %v459
        %v495 = vpop.xlane.xlu0 %494
        %496 = vadd.xlane.f32.xlu0 %v462
        %v497 = vpop.xlane.xlu0 %496
        %498 = vadd.xlane.f32.xlu0 %v467
        %v499 = vpop.xlane.xlu0 %498
        %500 = vadd.xlane.f32.xlu0 %v470
        %v501 = vpop.xlane.xlu0 %500
        %v502 = vadd.f32 %v351, %v495
        %v503 = vadd.f32 %v352, %v497
        %v504 = vadd.f32 %v353, %v499
        %v505 = vadd.f32 %v354, %v501
        %v506 = vmul.f32 %v459, %v459
        %v507 = vmul.f32 %v462, %v462
        %v508 = vmul.f32 %v467, %v467
        %v509 = vmul.f32 %v470, %v470
        %510 = vadd.xlane.f32.xlu0 %v506
        %v511 = vpop.xlane.xlu0 %510
        %512 = vadd.xlane.f32.xlu0 %v507
        %v513 = vpop.xlane.xlu0 %512
        %514 = vadd.xlane.f32.xlu0 %v508
        %v515 = vpop.xlane.xlu0 %514
        %516 = vadd.xlane.f32.xlu0 %v509
        %v517 = vpop.xlane.xlu0 %516
        %v518 = vadd.f32 %v367, %v511
        %v519 = vadd.f32 %v368, %v513
        %v520 = vadd.f32 %v369, %v515
        %v521 = vadd.f32 %v370, %v517
        %vm522 = vcmask 7168
        %523 = vst.msk [vmem:[%s219] sm:$0xff] %vm522, %v502
        %524 = vst.msk [vmem:[%s219 + $0x8] sm:$0xff] %vm522, %v503
        %525 = vst.msk [vmem:[%s219 + $0x10] sm:$0xff] %vm522, %v504
        %526 = vst.msk [vmem:[%s219 + $0x18] sm:$0xff] %vm522, %v505
        %vm527 = vcmask 15368
        %528 = vst.msk [vmem:[%s219] sm:$0xff] %vm527, %v518
        %529 = vst.msk [vmem:[%s219 + $0x8] sm:$0xff] %vm527, %v519
        %530 = vst.msk [vmem:[%s219 + $0x10] sm:$0xff] %vm527, %v520
        %531 = vst.msk [vmem:[%s219 + $0x18] sm:$0xff] %vm527, %v521
        %s532 = sand.u32 %s77, 1
        %s533 = scalar_lea.sflag [#allocation4], %s532
        %s534 = sand.u32 %s77, 1
        %s535 = smul.addr %s534, 32
        %s536 = scalar_lea.vmem [#allocation7], %s535
        %p537 = scmp.lt.s32.totalorder %s22, 1
        %s538 = scalar_select %p537, %s22, 1
        %s539 = smul.addr %s538, 4
        %s540 = smul.addr %s539, 8
        %s541 = scalar_lea.vmem %s3, %s540
        // Predicated region
        $region37: #{tpu_custom_call.1} parent=27 // pred_check
          %p542 = pneg %p87
        $region38: #{tpu_custom_call.1} parent=27 // pred_check_branch
          %544 = sbr.rel (%p542) target = $region40
        $region39: #{tpu_custom_call.1} parent=27 // pred_region
          %s545 = smul.u32 2, %s22
          %s547 = ssub.s32 512, 512
          %548 = vsyncadd %s533, %s547
          %s549 = smul.addr %s545, 4
          %s550 = smul.addr %s549, 64
          %s551 = scalar_lea.hbm %s2, %s550
          %s552 = sshll.u32 %s536, 4
          %s553 = int_to_ptr.vmem [resolvable:$true] %s552
          %558 = dma.vmem_to_hbm [thread:$0]  %s553, 512, %s551, %s533, 64, 64, 4
        $region40: #{tpu_custom_call.1} parent=27 // pred_fallthru
          _
        // Predicated region
        $region41: #{tpu_custom_call.1} parent=27 // pred_check
          %p559 = pneg %p113
        $region42: #{tpu_custom_call.1} parent=27 // pred_check_branch
          %561 = sbr.rel (%p559) target = $region44
        $region43: #{tpu_custom_call.1} parent=27 // pred_region
          _
        $region44: #{tpu_custom_call.1} parent=27 // pred_fallthru
          _
      $region28: #{tpu_custom_call.1} parent=5 // pred_fallthru
        _
      %p562 = scmp.le.s32.totalorder 2, %s17
      // Predicated region
      $region45: #{tpu_custom_call.1} parent=5 // pred_check
        %p563 = pneg %p562
      $region46: #{tpu_custom_call.1} parent=5 // pred_check_branch
        %565 = sbr.rel (%p563) target = $region48
      $region47: #{tpu_custom_call.1} parent=5 // pred_region
        %s566 = ssub.s32 %s17, 2
        // Predicated region
        $region49: #{tpu_custom_call.1} parent=47 // pred_check
          %p567 = pneg %p93
        $region50: #{tpu_custom_call.1} parent=47 // pred_check_branch
          %569 = sbr.rel (%p567) target = $region52
        $region51: #{tpu_custom_call.1} parent=47 // pred_region
          %s570 = sand.u32 %s78, 1
          %s571 = scalar_lea.sflag [#allocation4], %s570
          %s572 = sand.u32 %s78, 1
          %s573 = smul.addr %s572, 32
          %s574 = scalar_lea.vmem [#allocation7], %s573
          %575 = dma.done %s571, 512
        $region52: #{tpu_custom_call.1} parent=47 // pred_fallthru
          _
        // Predicated region
        $region53: #{tpu_custom_call.1} parent=47 // pred_check
          %p576 = pneg %p119
        $region54: #{tpu_custom_call.1} parent=47 // pred_check_branch
          %578 = sbr.rel (%p576) target = $region56
        $region55: #{tpu_custom_call.1} parent=47 // pred_region
          %p579 = scmp.lt.s32.totalorder %s23, 1
          %s580 = scalar_select %p579, %s23, 1
          %s581 = smul.addr %s580, 4
          %s582 = smul.addr %s581, 8
          %s583 = scalar_lea.vmem %s3, %s582
        $region56: #{tpu_custom_call.1} parent=47 // pred_fallthru
          _
      $region48: #{tpu_custom_call.1} parent=5 // pred_fallthru
        _
    $region6: #{tpu_custom_call.1} parent=1 // loop_footer
      %s21 = sadd.s32 1, %s17
    $region7: #{tpu_custom_call.1} parent=1 // loop_footer_branch
      %16 = sbr.rel target = $region3
    $region8: #{tpu_custom_call.1} parent=1 // loop_exit
      _
    %584 = vsyncpa [#allocation3], 1
    %s585 = scalar_lea.sflag [#allocation3], 1
    %586 = vsyncpa %s585, 1
    %587 = vsyncpa [#allocation6], 1
    %588 = vsyncpa [#allocation4], 1
    %s589 = scalar_lea.sflag [#allocation4], 1
    %590 = vsyncpa %s589, 1

</llo_original>
